<compile_context>
chip_gen: v7x
topology: tpu7x:2x2x1
jax: 0.10.0
libtpu: 0.0.40
codegen_flags: <defaults>
</compile_context>

<pallas_src>
import functools

import jax
import jax.numpy as jnp
from jax.experimental import pallas as pl
from jax.experimental.pallas import tpu as pltpu

_MIN_DMA_RUN_BYTES = 512            # below this, strided HBM->HBM DMA is wasteful
_VMEM_BLOCK_BYTES = 2 * 1024 * 1024  # per-block budget for the VMEM fallback path


def _concat_dma_kernel(col_offsets, col_sizes, rows_per_step, *refs):
    """HBM->HBM concat: one async DMA per input into its column slice of out.

    refs = (*input_hbm_refs, out_hbm_ref, dma_sems).  All arrays are 2-D
    collapsed views (rows, cols).  grid axis 0 splits the rows so that on v7x
    both TensorCores drive DMA issue; all per-step DMAs are in flight
    concurrently (disjoint destinations, so no races) before we wait.
    """
    *in_refs, out_ref, sems = refs
    row_start = pl.program_id(0) * rows_per_step

    copies = []
    for i, src in enumerate(in_refs):
        off = col_offsets[i]
        c = col_sizes[i]
        cp = pltpu.make_async_copy(
            src.at[pl.ds(row_start, rows_per_step), :],
            out_ref.at[pl.ds(row_start, rows_per_step), off:off + c],
            sems.at[i],
        )
        cp.start()
        copies.append(cp)

    for cp in copies:
        cp.wait()


def _concat_vmem_kernel(col_offsets, *refs):
    """VMEM-tiled fallback: copy each input block into its column slice."""
    *in_refs, out_ref = refs
    for i, src in enumerate(in_refs):
        off = col_offsets[i]
        c = src.shape[-1]
        out_ref[:, off:off + c] = src[...]


def _choose_row_tile(rows, total_cols, itemsize):
    """Row-tile size for the VMEM path: multiple of 8 (or full extent)."""
    per_row = max(1, 2 * total_cols * itemsize)  # inputs + output per row
    tr = max(8, _VMEM_BLOCK_BYTES // per_row)
    tr = max(8, (tr // 8) * 8)
    if tr >= rows:
        return rows  # single block covering the full row extent is always legal
    return tr


def concat_layer(xs, dimension=1):
    """Pallas equivalent of ConcatLayer.forward: torch.cat(xs, dim=dimension)."""
    xs = list(xs)
    assert len(xs) >= 1
    ndim = xs[0].ndim
    dimension = dimension % ndim
    dtype = xs[0].dtype
    base = xs[0].shape
    for x in xs:
        assert x.ndim == ndim and x.dtype == dtype
        for ax in range(ndim):
            if ax != dimension:
                assert x.shape[ax] == base[ax], (x.shape, base)

    out_dim = sum(int(x.shape[dimension]) for x in xs)
    out_shape_tuple = tuple(
        out_dim if ax == dimension else int(base[ax]) for ax in range(ndim)
    )

    # Degenerate output: nothing to copy.
    if any(d == 0 for d in out_shape_tuple):
        return jnp.zeros(out_shape_tuple, dtype)

    # Drop zero-width inputs (they contribute nothing; avoids zero-size DMAs).
    xs = [x for x in xs if int(x.shape[dimension]) != 0]

    # Collapse to 2-D: rows x (concat-dim * trailing dims).  Free reshape.
    rows = 1
    for ax in range(dimension):
        rows *= int(base[ax])
    inner = 1
    for ax in range(dimension + 1, ndim):
        inner *= int(base[ax])
    col_sizes = tuple(int(x.shape[dimension]) * inner for x in xs)
    total_cols = sum(col_sizes)
    col_offsets = []
    off = 0
    for c in col_sizes:
        col_offsets.append(off)
        off += c
    col_offsets = tuple(col_offsets)

    xs2d = [x.reshape(rows, c) for x, c in zip(xs, col_sizes)]
    itemsize = jnp.dtype(dtype).itemsize

    # Pure copy: bytes in + bytes out, zero flops.
    total_bytes = int(sum(x.size * itemsize for x in xs2d))
    cost = pl.CostEstimate(flops=0, transcendentals=0,
                           bytes_accessed=2 * total_bytes)
    out2d_shape = jax.ShapeDtypeStruct((rows, total_cols), dtype)

    min_run_bytes = min(col_sizes) * itemsize
    if min_run_bytes >= _MIN_DMA_RUN_BYTES or rows == 1:
        # ---- Fast path: direct HBM->HBM DMAs, no VMEM staging. ----
        n_split = 2 if (rows >= 2 and rows % 2 == 0) else 1
        rows_per_step = rows // n_split
        out2d = pl.pallas_call(
            functools.partial(_concat_dma_kernel, col_offsets, col_sizes,
                              rows_per_step),
            out_shape=out2d_shape,
            grid=(n_split,),
            in_specs=[pl.BlockSpec(memory_space=pl.ANY) for _ in xs2d],
            out_specs=pl.BlockSpec(memory_space=pl.ANY),
            scratch_shapes=[pltpu.SemaphoreType.DMA((len(xs2d),))],
            compiler_params=pltpu.CompilerParams(
                dimension_semantics=("parallel",),
                has_side_effects=True),
            cost_estimate=cost,
        )(*xs2d)
    else:
        # ---- Fallback: VMEM-tiled vector copies (lane-dense output blocks). ----
        tr = _choose_row_tile(rows, total_cols, itemsize)
        out2d = pl.pallas_call(
            functools.partial(_concat_vmem_kernel, col_offsets),
            out_shape=out2d_shape,
            grid=(pl.cdiv(rows, tr),),
            in_specs=[pl.BlockSpec((tr, c), lambda r: (r, 0))
                      for c in col_sizes],
            out_specs=pl.BlockSpec((tr, total_cols), lambda r: (r, 0)),
            compiler_params=pltpu.CompilerParams(
                dimension_semantics=("parallel",)),
            cost_estimate=cost,
        )(*xs2d)

    return out2d.reshape(out_shape_tuple)


if __name__ == "__main__":
    key = jax.random.PRNGKey(0)
    k1, k2, k3, k4, k5 = jax.random.split(key, 5)

    # Test 1: typical NCHW channel concat (DMA fast path), incl. a zero-width input.
    x1 = jax.random.normal(k1, (2, 3, 16, 16), dtype=jnp.float32)
    x2 = jax.random.normal(k2, (2, 4, 16, 16), dtype=jnp.float32)
    x3 = jax.random.normal(k3, (2, 5, 16, 16), dtype=jnp.float32)
    x0 = jnp.zeros((2, 0, 16, 16), dtype=jnp.float32)
    xs_a = [x1, x0, x2, x3]
    out_a = jax.block_until_ready(concat_layer(xs_a, dimension=1))
    ref_a = jnp.concatenate(xs_a, axis=1)
    assert out_a.shape == ref_a.shape and out_a.dtype == ref_a.dtype
    assert jnp.array_equal(out_a, ref_a), "DMA-path concat mismatch"

    # Test 2: last-dim concat of narrow tensors (VMEM fallback path).
    y1 = jax.random.normal(k4, (2, 8, 16, 5), dtype=jnp.float32)
    y2 = jax.random.normal(k5, (2, 8, 16, 7), dtype=jnp.float32)
    xs_b = [y1, y2]
    out_b = jax.block_until_ready(concat_layer(xs_b, dimension=-1))
    ref_b = jnp.concatenate(xs_b, axis=-1)
    assert out_b.shape == ref_b.shape and out_b.dtype == ref_b.dtype
    assert jnp.array_equal(out_b, ref_b), "VMEM-path concat mismatch"

    print("KERNEL_OK")
</pallas_src>

<mosaic_0001>
module attributes {stable_mosaic.version = 11 : i64} {
  func.func @_concat_dma_kernel(%arg0: i32, %arg1: memref<2x768xf32, #tpu.memory_space<any>>, %arg2: memref<2x1024xf32, #tpu.memory_space<any>>, %arg3: memref<2x1280xf32, #tpu.memory_space<any>>, %arg4: memref<2x3072xf32, #tpu.memory_space<any>>, %arg5: memref<3x!tpu.dma_semaphore, #tpu.memory_space<semaphore_mem>>) attributes {dimension_semantics = [#tpu.dimension_semantics<parallel>], iteration_bounds = array<i64: 2>, scalar_prefetch = 0 : i64, scratch_operands = 1 : i64, tpu.core_type = #tpu.core_type<tc>, window_params = [{}, {}, {}, {}]} {
    %c1_i32 = arith.constant 1 : i32
    %0 = arith.muli %arg0, %c1_i32 : i32
    %c0_i32 = arith.constant 0 : i32
    %c0_i32_0 = arith.constant 0 : i32
    %1 = tpu.memref_slice %arg1[%0, %c0_i32_0] : memref<2x768xf32, #tpu.memory_space<any>> -> memref<1x768xf32, #tpu.memory_space<any>>
    %c0_i32_1 = arith.constant 0 : i32
    %2 = tpu.memref_slice %arg4[%0, %c0_i32_1] : memref<2x3072xf32, #tpu.memory_space<any>> -> memref<1x768xf32, #tpu.memory_space<any>>
    %3 = tpu.memref_slice %arg5[%c0_i32] : memref<3x!tpu.dma_semaphore, #tpu.memory_space<semaphore_mem>> -> memref<1x!tpu.dma_semaphore, #tpu.memory_space<semaphore_mem>>
    %4 = tpu.memref_squeeze %3 : memref<1x!tpu.dma_semaphore, #tpu.memory_space<semaphore_mem>> -> memref<!tpu.dma_semaphore, #tpu.memory_space<semaphore_mem>>
    tpu.enqueue_dma source(%1 : memref<1x768xf32, #tpu.memory_space<any>>) target(%2 : memref<1x768xf32, #tpu.memory_space<any>>) target_semaphore(%4 : memref<!tpu.dma_semaphore, #tpu.memory_space<semaphore_mem>>)
    %c1_i32_2 = arith.constant 1 : i32
    %c0_i32_3 = arith.constant 0 : i32
    %5 = tpu.memref_slice %arg2[%0, %c0_i32_3] : memref<2x1024xf32, #tpu.memory_space<any>> -> memref<1x1024xf32, #tpu.memory_space<any>>
    %c768_i32 = arith.constant 768 : i32
    %6 = tpu.memref_slice %arg4[%0, %c768_i32] : memref<2x3072xf32, #tpu.memory_space<any>> -> memref<1x1024xf32, #tpu.memory_space<any>>
    %7 = tpu.memref_slice %arg5[%c1_i32_2] : memref<3x!tpu.dma_semaphore, #tpu.memory_space<semaphore_mem>> -> memref<1x!tpu.dma_semaphore, #tpu.memory_space<semaphore_mem>>
    %8 = tpu.memref_squeeze %7 : memref<1x!tpu.dma_semaphore, #tpu.memory_space<semaphore_mem>> -> memref<!tpu.dma_semaphore, #tpu.memory_space<semaphore_mem>>
    tpu.enqueue_dma source(%5 : memref<1x1024xf32, #tpu.memory_space<any>>) target(%6 : memref<1x1024xf32, #tpu.memory_space<any>>) target_semaphore(%8 : memref<!tpu.dma_semaphore, #tpu.memory_space<semaphore_mem>>)
    %c2_i32 = arith.constant 2 : i32
    %c0_i32_4 = arith.constant 0 : i32
    %9 = tpu.memref_slice %arg3[%0, %c0_i32_4] : memref<2x1280xf32, #tpu.memory_space<any>> -> memref<1x1280xf32, #tpu.memory_space<any>>
    %c1792_i32 = arith.constant 1792 : i32
    %10 = tpu.memref_slice %arg4[%0, %c1792_i32] : memref<2x3072xf32, #tpu.memory_space<any>> -> memref<1x1280xf32, #tpu.memory_space<any>>
    %11 = tpu.memref_slice %arg5[%c2_i32] : memref<3x!tpu.dma_semaphore, #tpu.memory_space<semaphore_mem>> -> memref<1x!tpu.dma_semaphore, #tpu.memory_space<semaphore_mem>>
    %12 = tpu.memref_squeeze %11 : memref<1x!tpu.dma_semaphore, #tpu.memory_space<semaphore_mem>> -> memref<!tpu.dma_semaphore, #tpu.memory_space<semaphore_mem>>
    tpu.enqueue_dma source(%9 : memref<1x1280xf32, #tpu.memory_space<any>>) target(%10 : memref<1x1280xf32, #tpu.memory_space<any>>) target_semaphore(%12 : memref<!tpu.dma_semaphore, #tpu.memory_space<semaphore_mem>>)
    %c0_i32_5 = arith.constant 0 : i32
    %c0_i32_6 = arith.constant 0 : i32
    %13 = tpu.memref_slice %arg1[%0, %c0_i32_6] : memref<2x768xf32, #tpu.memory_space<any>> -> memref<1x768xf32, #tpu.memory_space<any>>
    %c0_i32_7 = arith.constant 0 : i32
    %14 = tpu.memref_slice %arg4[%0, %c0_i32_7] : memref<2x3072xf32, #tpu.memory_space<any>> -> memref<1x768xf32, #tpu.memory_space<any>>
    %15 = tpu.memref_slice %arg5[%c0_i32_5] : memref<3x!tpu.dma_semaphore, #tpu.memory_space<semaphore_mem>> -> memref<1x!tpu.dma_semaphore, #tpu.memory_space<semaphore_mem>>
    %16 = tpu.memref_squeeze %15 : memref<1x!tpu.dma_semaphore, #tpu.memory_space<semaphore_mem>> -> memref<!tpu.dma_semaphore, #tpu.memory_space<semaphore_mem>>
    tpu.wait_dma2 semaphore(%16 : memref<!tpu.dma_semaphore, #tpu.memory_space<semaphore_mem>>) src(%13 : memref<1x768xf32, #tpu.memory_space<any>>) dst(%14 : memref<1x768xf32, #tpu.memory_space<any>>)
    %c1_i32_8 = arith.constant 1 : i32
    %c0_i32_9 = arith.constant 0 : i32
    %17 = tpu.memref_slice %arg2[%0, %c0_i32_9] : memref<2x1024xf32, #tpu.memory_space<any>> -> memref<1x1024xf32, #tpu.memory_space<any>>
    %c768_i32_10 = arith.constant 768 : i32
    %18 = tpu.memref_slice %arg4[%0, %c768_i32_10] : memref<2x3072xf32, #tpu.memory_space<any>> -> memref<1x1024xf32, #tpu.memory_space<any>>
    %19 = tpu.memref_slice %arg5[%c1_i32_8] : memref<3x!tpu.dma_semaphore, #tpu.memory_space<semaphore_mem>> -> memref<1x!tpu.dma_semaphore, #tpu.memory_space<semaphore_mem>>
    %20 = tpu.memref_squeeze %19 : memref<1x!tpu.dma_semaphore, #tpu.memory_space<semaphore_mem>> -> memref<!tpu.dma_semaphore, #tpu.memory_space<semaphore_mem>>
    tpu.wait_dma2 semaphore(%20 : memref<!tpu.dma_semaphore, #tpu.memory_space<semaphore_mem>>) src(%17 : memref<1x1024xf32, #tpu.memory_space<any>>) dst(%18 : memref<1x1024xf32, #tpu.memory_space<any>>)
    %c2_i32_11 = arith.constant 2 : i32
    %c0_i32_12 = arith.constant 0 : i32
    %21 = tpu.memref_slice %arg3[%0, %c0_i32_12] : memref<2x1280xf32, #tpu.memory_space<any>> -> memref<1x1280xf32, #tpu.memory_space<any>>
    %c1792_i32_13 = arith.constant 1792 : i32
    %22 = tpu.memref_slice %arg4[%0, %c1792_i32_13] : memref<2x3072xf32, #tpu.memory_space<any>> -> memref<1x1280xf32, #tpu.memory_space<any>>
    %23 = tpu.memref_slice %arg5[%c2_i32_11] : memref<3x!tpu.dma_semaphore, #tpu.memory_space<semaphore_mem>> -> memref<1x!tpu.dma_semaphore, #tpu.memory_space<semaphore_mem>>
    %24 = tpu.memref_squeeze %23 : memref<1x!tpu.dma_semaphore, #tpu.memory_space<semaphore_mem>> -> memref<!tpu.dma_semaphore, #tpu.memory_space<semaphore_mem>>
    tpu.wait_dma2 semaphore(%24 : memref<!tpu.dma_semaphore, #tpu.memory_space<semaphore_mem>>) src(%21 : memref<1x1280xf32, #tpu.memory_space<any>>) dst(%22 : memref<1x1280xf32, #tpu.memory_space<any>>)
    return
  }
}

</mosaic_0001>

<llo_original>
// kernel: tpu_custom_call.1
$region0: #{tpu_custom_call.1}
  #allocation0 [shape = 'u32[]', space=smem, size = 0x4, offset = 0x4, fixed_abs, tag = 'smem constant byte address 0x4 - core index']
  #allocation1 [shape = 'u32[144,128]{1,0:T(1,128)}', space=vmem, size = 0x12000, scoped, tag = 'internal scratch']
  #allocation2 [shape = 's32[3]{0}', space=sflag, size = 0xc, scoped, tag = 'scratch operand']
  #allocation3 [shape = 's32[]', space=sflag, size = 0x4, offset = 0, fixed_abs, tag = 'sflag constant byte address 0x0 - dummy sync flag']
  #allocation5 [shape = 's32[]', space=sflag, size = 0x4, offset = 0, fixed_abs, tag = 'sflag constant byte address 0x0 - dummy sync flag']
  #allocation7 [shape = 's32[]', space=sflag, size = 0x4, offset = 0, fixed_abs, tag = 'sflag constant byte address 0x0 - dummy sync flag']
  %s0 = inlined_call_operand.hbm [shape: f32[2,768], index: 0, kind: input, shape index: {}]
  %s1 = inlined_call_operand.hbm [shape: f32[2,1024], index: 1, kind: input, shape index: {}]
  %s2 = inlined_call_operand.hbm [shape: f32[2,1280], index: 2, kind: input, shape index: {}]
  %s3 = inlined_call_operand.hbm [shape: f32[2,3072], index: 3, kind: output, shape index: {}]
  %s4 = sld [smem:[#allocation0]]
  $region9: #{tpu_custom_call.1} parent=0
    _
  %s6 = ssub.s32 1, %s4
  %s7 = scalar_select 0, %s6, %s4
  loop: start=0, step=1, limit=2
  $region2: #{tpu_custom_call.1} parent=0 // loop_pre_header
    _
  $region3: #{tpu_custom_call.1} parent=0 // loop_header
    %s9 = sphi 0, %s13
    %p10 = scmp.ge.s32.totalorder %s9, 2
  $region4: #{tpu_custom_call.1} parent=0 // loop_header_branch
    %12 = sbr.rel (%p10) target = $region8
  $region5: #{tpu_custom_call.1} parent=0 // loop_body
    #allocation4 [shape = 'u32[3]{0}', space=smem, size = 0xc, scoped, tag = 'DMA stride descriptor']
    #allocation6 [shape = 'u32[3]{0}', space=smem, size = 0xc, scoped, tag = 'DMA stride descriptor']
    #allocation8 [shape = 'u32[3]{0}', space=smem, size = 0xc, scoped, tag = 'DMA stride descriptor']
    %s14 = sadd.s32 %s9, 1
    %s15 = sshrl.u32 %s9, 1
    %s16 = sand.u32 %s9, 1
    %s17 = smul.u32 %s15, 12
    %s18 = sadd.s32 %s16, %s17
    %s19 = smul.addr %s18, 16
    %s20 = scalar_lea.hbm %s0, %s19
    %s21 = smul.u32 %s15, 48
    %s22 = sadd.s32 %s16, %s21
    %s23 = smul.addr %s22, 16
    %s24 = scalar_lea.hbm %s3, %s23
    %s26 = sshll.u32 1, 14
    %s27 = sxor.u32 4294967295, %s26
    %s30 = sshll.u32 3, 24
    %s31 = sxor.u32 4294967295, %s30
    %s32 = sand.u32 0, %s31
    %s34 = sor.u32 %s32, 0
    %37 = sst [smem:[#allocation4]] 32
    %s38 = scalar_lea.smem [#allocation4], 1
    %39 = sst [smem:[%s38]] 32
    %s40 = scalar_lea.smem [#allocation4], 2
    %41 = sst [smem:[%s40]] 1
    %43 = dma.general %s20, 96, %s24, [#allocation2], [#allocation3], [#allocation4], %s34, 0
    %s44 = smul.u32 %s15, 16
    %s45 = sadd.s32 %s16, %s44
    %s46 = smul.addr %s45, 16
    %s47 = scalar_lea.hbm %s1, %s46
    %s48 = sadd.s32 12, %s22
    %s49 = smul.addr %s48, 16
    %s50 = scalar_lea.hbm %s3, %s49
    %s51 = scalar_lea.sflag [#allocation2], 1
    %s53 = sshll.u32 1, 14
    %s54 = sxor.u32 4294967295, %s53
    %s57 = sshll.u32 3, 24
    %s58 = sxor.u32 4294967295, %s57
    %s59 = sand.u32 0, %s58
    %s61 = sor.u32 %s59, 0
    %64 = sst [smem:[#allocation6]] 32
    %s65 = scalar_lea.smem [#allocation6], 1
    %66 = sst [smem:[%s65]] 32
    %s67 = scalar_lea.smem [#allocation6], 2
    %68 = sst [smem:[%s67]] 1
    %70 = dma.general %s47, 128, %s50, %s51, [#allocation5], [#allocation6], %s61, 0
    %s71 = smul.u32 %s15, 20
    %s72 = sadd.s32 %s16, %s71
    %s73 = smul.addr %s72, 16
    %s74 = scalar_lea.hbm %s2, %s73
    %s75 = sadd.s32 28, %s22
    %s76 = smul.addr %s75, 16
    %s77 = scalar_lea.hbm %s3, %s76
    %s78 = scalar_lea.sflag [#allocation2], 2
    %s80 = sshll.u32 1, 14
    %s81 = sxor.u32 4294967295, %s80
    %s84 = sshll.u32 3, 24
    %s85 = sxor.u32 4294967295, %s84
    %s86 = sand.u32 0, %s85
    %s88 = sor.u32 %s86, 0
    %91 = sst [smem:[#allocation8]] 32
    %s92 = scalar_lea.smem [#allocation8], 1
    %93 = sst [smem:[%s92]] 32
    %s94 = scalar_lea.smem [#allocation8], 2
    %95 = sst [smem:[%s94]] 1
    %97 = dma.general %s74, 160, %s77, %s78, [#allocation7], [#allocation8], %s88, 0
    %s98 = smul.u32 1, 6
    %s99 = sshll.u32 %s98, 4
    %100 = dma.done [#allocation2], %s99
    %s101 = smul.u32 1, 8
    %s102 = sshll.u32 %s101, 4
    %103 = dma.done %s51, %s102
    %s104 = smul.u32 1, 10
    %s105 = sshll.u32 %s104, 4
    %106 = dma.done %s78, %s105
  $region6: #{tpu_custom_call.1} parent=0 // loop_footer
    %s13 = sadd.s32 1, %s9
  $region7: #{tpu_custom_call.1} parent=0 // loop_footer_branch
    %8 = sbr.rel target = $region3
  $region8: #{tpu_custom_call.1} parent=0 // loop_exit
    _
  %107 = vsyncmov [#allocation2]
  %s108 = vpop.sfrf %107
  %p109 = scmp.eq.s32.totalorder %s108, 0
  %p110 = pneg %p109
  %112 = shalt.err (%p110)
  %s113 = scalar_lea.sflag [#allocation2], 1
  %114 = vsyncmov %s113
  %s115 = vpop.sfrf %114
  %p116 = scmp.eq.s32.totalorder %s115, 0
  %p117 = pneg %p116
  %119 = shalt.err (%p117)
  %s120 = scalar_lea.sflag [#allocation2], 2
  %121 = vsyncmov %s120
  %s122 = vpop.sfrf %121
  %p123 = scmp.eq.s32.totalorder %s122, 0
  %p124 = pneg %p123
  %126 = shalt.err (%p124)

</llo_original>
